<compile_context>
chip_gen: v5e
topology: v5e:2x2
jax: 0.10.0
libtpu: 0.0.40
codegen_flags: <defaults>
</compile_context>

<pallas_src>
import jax
import jax.numpy as jnp
from jax.experimental import pallas as pl
from jax.experimental.pallas import tpu as pltpu

LN_EPS = 1e-5

# Column layout of the packed parameter slab (shape (H, 8)).
_COL_B1, _COL_G1, _COL_BE1, _COL_B2, _COL_G2, _COL_BE2, _COL_WV, _COL_BV = range(8)


def _layernorm_feat(x, gamma, beta):
    """LayerNorm over the feature (sublane) axis of a feature-major block.

    x: (H, bt), gamma/beta: (H, 1).  Biased variance with eps inside rsqrt,
    matching torch.nn.LayerNorm.
    """
    mean = jnp.mean(x, axis=0, keepdims=True)           # (1, bt)
    xc = x - mean
    var = jnp.mean(xc * xc, axis=0, keepdims=True)      # (1, bt)
    inv = jax.lax.rsqrt(var + LN_EPS)
    return xc * inv * gamma + beta


def critic_kernel(xT_ref, w1_ref, w2_ref, p_ref, out_ref):
    xT = xT_ref[...]                                    # (K, bt)  batch on lanes
    p = p_ref[...]                                      # (H, 8)   packed params

    b1 = p[:, _COL_B1:_COL_B1 + 1]                      # (H, 1)
    g1 = p[:, _COL_G1:_COL_G1 + 1]
    be1 = p[:, _COL_BE1:_COL_BE1 + 1]
    b2 = p[:, _COL_B2:_COL_B2 + 1]
    g2 = p[:, _COL_G2:_COL_G2 + 1]
    be2 = p[:, _COL_BE2:_COL_BE2 + 1]
    wv = p[:, _COL_WV:_COL_WV + 1]
    bv = p[0:1, _COL_BV:_COL_BV + 1]                    # (1, 1); column is replicated

    # linear1 (+bias) -> LN1 -> tanh, all feature-major (H, bt).
    h = jnp.dot(w1_ref[...], xT, preferred_element_type=jnp.float32) + b1
    h = jnp.tanh(_layernorm_feat(h, g1, be1))

    # linear2 (+bias) -> LN2 -> tanh.
    h = jnp.dot(w2_ref[...], h, preferred_element_type=jnp.float32) + b2
    h = jnp.tanh(_layernorm_feat(h, g2, be2))

    # Value head: multiply by wv column, reduce over features (sublanes), add bv.
    v = jnp.sum(h * wv, axis=0, keepdims=True) + bv     # (1, bt) lane-dense
    out_ref[...] = v.astype(out_ref.dtype)


def _round_up(x, m):
    return ((x + m - 1) // m) * m


def _choose_tiling(B):
    """Pick (bt, grid) for the batch (lane) axis."""
    if B <= 1024:
        return B, 1                                     # single full block, no padding
    # Mid-size batches: two lane-aligned tiles so both v7x TensorCores get work.
    bt = _round_up(pl.cdiv(B, 2), 128)
    if bt <= 4096:
        return bt, pl.cdiv(B, bt)
    # Large batches: fixed 4096-lane tiles (~320 KB of activations per tile,
    # trivially inside VMEM on v5e/v6e/v7x, double-buffered).
    bt = 4096
    return bt, pl.cdiv(B, bt)


def critic_forward(inputs, actions, params):
    """inputs: (B, num_inputs), actions: (B, num_actions) -> (B, 1)."""
    # Concat once and transpose to feature-major (K, B) so batch sits on lanes.
    x = jnp.concatenate([inputs, actions], axis=1)      # (B, K)
    B, K = x.shape
    H = params["w1"].shape[0]

    bt, grid = _choose_tiling(B)
    b_pad = bt * grid
    xT = x.T                                            # (K, B)
    if b_pad != B:
        xT = jnp.pad(xT, ((0, 0), (0, b_pad - B)))      # zero-pad tail batch tile

    out = pl.pallas_call(
        critic_kernel,
        out_shape=jax.ShapeDtypeStruct((grid, bt), jnp.float32),
        grid=(grid,),
        in_specs=[
            pl.BlockSpec((K, bt), lambda i: (0, i)),    # activations, batch-tiled
            pl.BlockSpec((H, K), lambda i: (0, 0)),     # w1, torch-native (out, in)
            pl.BlockSpec((H, H), lambda i: (0, 0)),     # w2
            pl.BlockSpec((H, 8), lambda i: (0, 0)),     # packed small params
        ],
        out_specs=pl.BlockSpec((1, bt), lambda i: (i, 0)),
        compiler_params=pltpu.CompilerParams(dimension_semantics=("parallel",)),
    )(xT, params["w1"], params["w2"], params["pslab"])

    # (grid, bt) -> (B, 1), dropping the zero-padded tail rows.
    return out.reshape(b_pad, 1)[:B]


def init_critic_params(key, hidden_size, num_inputs, action_space):
    """Deterministic init matching the PyTorch __init__ shapes/distributions."""
    k1, k2, k3, kb1, kb2, kb3 = jax.random.split(key, 6)
    n_in = num_inputs + action_space
    H = hidden_size

    # linear1: weight ~ N(0, 0.02); bias = torch default U(+-1/sqrt(fan_in)).
    w1 = jax.random.normal(k1, (H, n_in), jnp.float32) * 0.02
    b1 = jax.random.uniform(kb1, (H,), jnp.float32,
                            -1.0 / jnp.sqrt(n_in), 1.0 / jnp.sqrt(n_in))
    # linear2: weight ~ N(0, 0.02).
    w2 = jax.random.normal(k2, (H, H), jnp.float32) * 0.02
    b2 = jax.random.uniform(kb2, (H,), jnp.float32,
                            -1.0 / jnp.sqrt(H), 1.0 / jnp.sqrt(H))
    # V head: weight ~ U(-0.003, 0.003); bias = torch default uniform.
    wv = jax.random.uniform(k3, (1, H), jnp.float32, -0.003, 0.003)
    bv = jax.random.uniform(kb3, (1,), jnp.float32,
                            -1.0 / jnp.sqrt(H), 1.0 / jnp.sqrt(H))

    ones = jnp.ones((H,), jnp.float32)
    zeros = jnp.zeros((H,), jnp.float32)
    # Packed (H, 8) slab, columns: b1, g1, be1, b2, g2, be2, wv, bv (replicated).
    pslab = jnp.stack(
        [b1, ones, zeros, b2, ones, zeros, wv[0], jnp.full((H,), bv[0])], axis=1)

    return {
        "w1": w1,         # (H, num_inputs+action_space), torch-native (out, in)
        "w2": w2,         # (H, H)
        "pslab": pslab,   # (H, 8)
    }


def critic_reference(inputs, actions, p):
    """Pure-JAX, batch-major reference for the correctness check."""
    x = jnp.concatenate([inputs, actions], axis=1)
    s = p["pslab"]
    b1, g1, be1 = s[:, _COL_B1], s[:, _COL_G1], s[:, _COL_BE1]
    b2, g2, be2 = s[:, _COL_B2], s[:, _COL_G2], s[:, _COL_BE2]
    wv, bv = s[:, _COL_WV], s[0, _COL_BV]

    def ln(h, g, be):
        mean = jnp.mean(h, axis=-1, keepdims=True)
        var = jnp.mean((h - mean) ** 2, axis=-1, keepdims=True)
        return (h - mean) * jax.lax.rsqrt(var + LN_EPS) * g + be

    h = jnp.tanh(ln(x @ p["w1"].T + b1, g1, be1))
    h = jnp.tanh(ln(h @ p["w2"].T + b2, g2, be2))
    return h @ wv[:, None] + bv


if __name__ == "__main__":
    hidden_size = 32
    num_inputs = 16
    action_space = 4
    batch = 8

    key = jax.random.PRNGKey(0)
    kp, ki, ka = jax.random.split(key, 3)

    params = init_critic_params(kp, hidden_size, num_inputs, action_space)
    inputs = jax.random.normal(ki, (batch, num_inputs), jnp.float32)
    actions = jax.random.normal(ka, (batch, action_space), jnp.float32)

    v = critic_forward(inputs, actions, params)
    v = jax.block_until_ready(v)

    v_ref = critic_reference(inputs, actions, params)
    assert v.shape == (batch, 1), v.shape
    assert jnp.allclose(v, v_ref, atol=1e-5, rtol=1e-5), (v, v_ref)

    print("KERNEL_OK")
</pallas_src>

<mosaic_0001>
module attributes {stable_mosaic.version = 11 : i64} {
  func.func @critic_kernel(%arg0: i32, %arg1: memref<20x8xf32, #tpu.memory_space<vmem>>, %arg2: memref<32x20xf32, #tpu.memory_space<vmem>>, %arg3: memref<32x32xf32, #tpu.memory_space<vmem>>, %arg4: memref<32x8xf32, #tpu.memory_space<vmem>>, %arg5: memref<1x8xf32, #tpu.memory_space<vmem>>) attributes {dimension_semantics = [#tpu.dimension_semantics<parallel>], iteration_bounds = array<i64: 1>, scalar_prefetch = 0 : i64, scratch_operands = 0 : i64, tpu.core_type = #tpu.core_type<tc>, window_params = [{transform_indices = @transform_0, window_bounds = array<i64: 20, 8>}, {pipeline_mode = #tpu.pipeline_mode<synchronous>, transform_indices = @transform_1, window_bounds = array<i64: 32, 20>}, {pipeline_mode = #tpu.pipeline_mode<synchronous>, transform_indices = @transform_2, window_bounds = array<i64: 32, 32>}, {pipeline_mode = #tpu.pipeline_mode<synchronous>, transform_indices = @transform_3, window_bounds = array<i64: 32, 8>}, {transform_indices = @transform_4, window_bounds = array<i64: 1, 8>}]} {
    %c0 = arith.constant 0 : index
    %c0_0 = arith.constant 0 : index
    %0 = vector.load %arg1[%c0, %c0_0] : memref<20x8xf32, #tpu.memory_space<vmem>>, vector<20x8xf32>
    %c0_1 = arith.constant 0 : index
    %c0_2 = arith.constant 0 : index
    %1 = vector.load %arg4[%c0_1, %c0_2] : memref<32x8xf32, #tpu.memory_space<vmem>>, vector<32x8xf32>
    %2 = vector.extract_strided_slice %1 {offsets = [0, 0], sizes = [32, 1], strides = [1, 1]} : vector<32x8xf32> to vector<32x1xf32>
    %3 = vector.extract_strided_slice %1 {offsets = [0, 1], sizes = [32, 1], strides = [1, 1]} : vector<32x8xf32> to vector<32x1xf32>
    %4 = vector.extract_strided_slice %1 {offsets = [0, 2], sizes = [32, 1], strides = [1, 1]} : vector<32x8xf32> to vector<32x1xf32>
    %5 = vector.extract_strided_slice %1 {offsets = [0, 3], sizes = [32, 1], strides = [1, 1]} : vector<32x8xf32> to vector<32x1xf32>
    %6 = vector.extract_strided_slice %1 {offsets = [0, 4], sizes = [32, 1], strides = [1, 1]} : vector<32x8xf32> to vector<32x1xf32>
    %7 = vector.extract_strided_slice %1 {offsets = [0, 5], sizes = [32, 1], strides = [1, 1]} : vector<32x8xf32> to vector<32x1xf32>
    %8 = vector.extract_strided_slice %1 {offsets = [0, 6], sizes = [32, 1], strides = [1, 1]} : vector<32x8xf32> to vector<32x1xf32>
    %9 = vector.extract_strided_slice %1 {offsets = [0, 7], sizes = [1, 1], strides = [1, 1]} : vector<32x8xf32> to vector<1x1xf32>
    %c0_3 = arith.constant 0 : index
    %c0_4 = arith.constant 0 : index
    %10 = vector.load %arg2[%c0_3, %c0_4] : memref<32x20xf32, #tpu.memory_space<vmem>>, vector<32x20xf32>
    %cst = arith.constant dense<0.000000e+00> : vector<32x8xf32>
    %11 = tpu.matmul %10, %0, %cst {dimension_numbers = #tpu.dot_dimension_numbers<[1], [0], [0], [1], [0, 0, 1, 1], [], []>} : vector<32x20xf32>, vector<20x8xf32>, vector<32x8xf32> -> vector<32x8xf32>
    %12 = vector.broadcast %2 : vector<32x1xf32> to vector<32x8xf32>
    %13 = arith.addf %11, %12 : vector<32x8xf32>
    %cst_5 = arith.constant dense<0.000000e+00> : vector<8xf32>
    %14 = vector.multi_reduction <add>, %13, %cst_5 [0] : vector<32x8xf32> to vector<8xf32>
    %15 = vector.shape_cast %14 : vector<8xf32> to vector<1x8xf32>
    %cst_6 = arith.constant 3.200000e+01 : f32
    %16 = vector.broadcast %cst_6 : f32 to vector<1x8xf32>
    %17 = arith.divf %15, %16 : vector<1x8xf32>
    %18 = vector.broadcast %17 : vector<1x8xf32> to vector<32x8xf32>
    %19 = arith.subf %13, %18 : vector<32x8xf32>
    %20 = arith.mulf %19, %19 : vector<32x8xf32>
    %cst_7 = arith.constant dense<0.000000e+00> : vector<8xf32>
    %21 = vector.multi_reduction <add>, %20, %cst_7 [0] : vector<32x8xf32> to vector<8xf32>
    %22 = vector.shape_cast %21 : vector<8xf32> to vector<1x8xf32>
    %cst_8 = arith.constant 3.200000e+01 : f32
    %23 = vector.broadcast %cst_8 : f32 to vector<1x8xf32>
    %24 = arith.divf %22, %23 : vector<1x8xf32>
    %cst_9 = arith.constant 9.99999974E-6 : f32
    %25 = vector.broadcast %cst_9 : f32 to vector<1x8xf32>
    %26 = arith.addf %24, %25 : vector<1x8xf32>
    %27 = math.rsqrt %26 : vector<1x8xf32>
    %28 = vector.broadcast %27 : vector<1x8xf32> to vector<32x8xf32>
    %29 = arith.mulf %19, %28 : vector<32x8xf32>
    %30 = vector.broadcast %3 : vector<32x1xf32> to vector<32x8xf32>
    %31 = arith.mulf %29, %30 : vector<32x8xf32>
    %32 = vector.broadcast %4 : vector<32x1xf32> to vector<32x8xf32>
    %33 = arith.addf %31, %32 : vector<32x8xf32>
    %34 = math.tanh %33 : vector<32x8xf32>
    %c0_10 = arith.constant 0 : index
    %c0_11 = arith.constant 0 : index
    %35 = vector.load %arg3[%c0_10, %c0_11] : memref<32x32xf32, #tpu.memory_space<vmem>>, vector<32x32xf32>
    %cst_12 = arith.constant dense<0.000000e+00> : vector<32x8xf32>
    %36 = tpu.matmul %35, %34, %cst_12 {dimension_numbers = #tpu.dot_dimension_numbers<[1], [0], [0], [1], [0, 0, 1, 1], [], []>} : vector<32x32xf32>, vector<32x8xf32>, vector<32x8xf32> -> vector<32x8xf32>
    %37 = vector.broadcast %5 : vector<32x1xf32> to vector<32x8xf32>
    %38 = arith.addf %36, %37 : vector<32x8xf32>
    %cst_13 = arith.constant dense<0.000000e+00> : vector<8xf32>
    %39 = vector.multi_reduction <add>, %38, %cst_13 [0] : vector<32x8xf32> to vector<8xf32>
    %40 = vector.shape_cast %39 : vector<8xf32> to vector<1x8xf32>
    %cst_14 = arith.constant 3.200000e+01 : f32
    %41 = vector.broadcast %cst_14 : f32 to vector<1x8xf32>
    %42 = arith.divf %40, %41 : vector<1x8xf32>
    %43 = vector.broadcast %42 : vector<1x8xf32> to vector<32x8xf32>
    %44 = arith.subf %38, %43 : vector<32x8xf32>
    %45 = arith.mulf %44, %44 : vector<32x8xf32>
    %cst_15 = arith.constant dense<0.000000e+00> : vector<8xf32>
    %46 = vector.multi_reduction <add>, %45, %cst_15 [0] : vector<32x8xf32> to vector<8xf32>
    %47 = vector.shape_cast %46 : vector<8xf32> to vector<1x8xf32>
    %cst_16 = arith.constant 3.200000e+01 : f32
    %48 = vector.broadcast %cst_16 : f32 to vector<1x8xf32>
    %49 = arith.divf %47, %48 : vector<1x8xf32>
    %cst_17 = arith.constant 9.99999974E-6 : f32
    %50 = vector.broadcast %cst_17 : f32 to vector<1x8xf32>
    %51 = arith.addf %49, %50 : vector<1x8xf32>
    %52 = math.rsqrt %51 : vector<1x8xf32>
    %53 = vector.broadcast %52 : vector<1x8xf32> to vector<32x8xf32>
    %54 = arith.mulf %44, %53 : vector<32x8xf32>
    %55 = vector.broadcast %6 : vector<32x1xf32> to vector<32x8xf32>
    %56 = arith.mulf %54, %55 : vector<32x8xf32>
    %57 = vector.broadcast %7 : vector<32x1xf32> to vector<32x8xf32>
    %58 = arith.addf %56, %57 : vector<32x8xf32>
    %59 = math.tanh %58 : vector<32x8xf32>
    %60 = vector.broadcast %8 : vector<32x1xf32> to vector<32x8xf32>
    %61 = arith.mulf %59, %60 : vector<32x8xf32>
    %cst_18 = arith.constant dense<0.000000e+00> : vector<8xf32>
    %62 = vector.multi_reduction <add>, %61, %cst_18 [0] : vector<32x8xf32> to vector<8xf32>
    %63 = vector.shape_cast %62 : vector<8xf32> to vector<1x8xf32>
    %64 = vector.broadcast %9 : vector<1x1xf32> to vector<1x8xf32>
    %65 = arith.addf %63, %64 : vector<1x8xf32>
    %c0_19 = arith.constant 0 : index
    %c0_20 = arith.constant 0 : index
    %66 = vector.load %arg5[%c0_19, %c0_20] : memref<1x8xf32, #tpu.memory_space<vmem>>, vector<1x8xf32>
    tpu.vector_store %arg5[%c0_19, %c0_20], %65 {strides = array<i32>} : memref<1x8xf32, #tpu.memory_space<vmem>>, vector<1x8xf32>,
    return
  }
  func.func @transform_0(%arg0: i32) -> (i32, i32) {
    %c0_i32 = arith.constant 0 : i32
    %c0_i32_0 = arith.constant 0 : i32
    return %c0_i32, %arg0 : i32, i32
  }
  func.func @transform_1(%arg0: i32) -> (i32, i32) {
    %c0_i32 = arith.constant 0 : i32
    %c0_i32_0 = arith.constant 0 : i32
    %c0_i32_1 = arith.constant 0 : i32
    return %c0_i32, %c0_i32_0 : i32, i32
  }
  func.func @transform_2(%arg0: i32) -> (i32, i32) {
    %c0_i32 = arith.constant 0 : i32
    %c0_i32_0 = arith.constant 0 : i32
    %c0_i32_1 = arith.constant 0 : i32
    return %c0_i32, %c0_i32_0 : i32, i32
  }
  func.func @transform_3(%arg0: i32) -> (i32, i32) {
    %c0_i32 = arith.constant 0 : i32
    %c0_i32_0 = arith.constant 0 : i32
    %c0_i32_1 = arith.constant 0 : i32
    return %c0_i32, %c0_i32_0 : i32, i32
  }
  func.func @transform_4(%arg0: i32) -> (i32, i32) {
    %c0_i32 = arith.constant 0 : i32
    %c0_i32_0 = arith.constant 0 : i32
    return %arg0, %c0_i32 : i32, i32
  }
}

</mosaic_0001>

<llo_original>
// kernel: tpu_custom_call.1
$region0: #{tpu_custom_call.1}
  #allocation0 [shape = 'u32[]', space=smem, size = 0x4, offset = 0x4, fixed_abs, tag = 'smem constant byte address 0x4 - core index']
  #allocation1 [shape = 'u32[72,128]{1,0:T(1,128)}', space=vmem, size = 0x9000, scoped, tag = 'internal scratch']
  %s0 = inlined_call_operand.vmem [shape: f32[20,8], index: 0, kind: input, shape index: {}]
  %s1 = inlined_call_operand.vmem [shape: f32[32,20], index: 1, kind: input, shape index: {}]
  %s2 = inlined_call_operand.vmem [shape: f32[32,32], index: 2, kind: input, shape index: {}]
  %s3 = inlined_call_operand.vmem [shape: f32[32,8], index: 3, kind: input, shape index: {}]
  %s4 = inlined_call_operand.hbm [shape: f32[1,8], index: 4, kind: output, shape index: {}]
  %s5 = sld [smem:[#allocation0]]
  $region26: #{tpu_custom_call.1} parent=0
    _
  %s7 = ssub.s32 1, %s5
  %s8 = scalar_select 0, %s7, %s5
  $region1: #{tpu_custom_call.1} parent=0
    #allocation2 [shape = 'u8[512]{0}', space=vmem, size = 0x400, scoped, tag = 'output window, operand 0, single buffered']
    #allocation3 [shape = 's32[1]{0}', space=sflag, size = 0x4, scoped, tag = 'scoped memory for tpu_custom_call.1']
    %9 = vsyncpa [#allocation3], 0
    // Predicated region
    $region2: #{tpu_custom_call.1} parent=1 // pred_check
      _
    $region3: #{tpu_custom_call.1} parent=1 // pred_check_branch
      %11 = sbr.rel (0) target = $region5
    $region4: #{tpu_custom_call.1} parent=1 // pred_region
      _
    $region5: #{tpu_custom_call.1} parent=1 // pred_fallthru
      _
    // Predicated region
    $region6: #{tpu_custom_call.1} parent=1 // pred_check
      _
    $region7: #{tpu_custom_call.1} parent=1 // pred_check_branch
      %13 = sbr.rel (0) target = $region9
    $region8: #{tpu_custom_call.1} parent=1 // pred_region
      _
    $region9: #{tpu_custom_call.1} parent=1 // pred_fallthru
      _
    // Predicated region
    $region10: #{tpu_custom_call.1} parent=1 // pred_check
      _
    $region11: #{tpu_custom_call.1} parent=1 // pred_check_branch
      %15 = sbr.rel (0) target = $region13
    $region12: #{tpu_custom_call.1} parent=1 // pred_region
      _
    $region13: #{tpu_custom_call.1} parent=1 // pred_fallthru
      _
    // Predicated region
    $region14: #{tpu_custom_call.1} parent=1 // pred_check
      _
    $region15: #{tpu_custom_call.1} parent=1 // pred_check_branch
      %17 = sbr.rel (0) target = $region17
    $region16: #{tpu_custom_call.1} parent=1 // pred_region
      _
    $region17: #{tpu_custom_call.1} parent=1 // pred_fallthru
      _
    %v18 = vld [vmem:[%s0] sm:$0xff]
    %v19 = vld [vmem:[%s0 + $0x8] sm:$0xff]
    %v20 = vld [vmem:[%s0 + $0x10] sm:$0xf]
    %v21 = vld [vmem:[%s3] sm:$0xff]
    %v22 = vld [vmem:[%s3 + $0x8] sm:$0xff]
    %v23 = vld [vmem:[%s3 + $0x10] sm:$0xff]
    %v24 = vld [vmem:[%s3 + $0x18] sm:$0xff]
    %v25 = vld [vmem:[%s1] sm:$0xff]
    %v26 = vld [vmem:[%s1 + $0x8] sm:$0xff]
    %v27 = vld [vmem:[%s1 + $0x10] sm:$0xff]
    %v28 = vld [vmem:[%s1 + $0x18] sm:$0xff]
    %30 = vset.pattern.permute.xlu0 0
    %31 = vperm.xlu0 %30, %v21
    %v32 = vpop.permute.xlu0 %31
    %35 = vset.pattern.permute.xlu0 0
    %36 = vperm.xlu0 %35, %v22
    %v37 = vpop.permute.xlu0 %36
    %40 = vset.pattern.permute.xlu0 0
    %41 = vperm.xlu0 %40, %v23
    %v42 = vpop.permute.xlu0 %41
    %45 = vset.pattern.permute.xlu0 0
    %46 = vperm.xlu0 %45, %v24
    %v47 = vpop.permute.xlu0 %46
    %vm49 = vcmask 162816
    %v51 = vsel %vm49, %v25, 0
    %v54 = vsel %vm49, %v26, 0
    %v57 = vsel %vm49, %v27, 0
    %v60 = vsel %vm49, %v28, 0
    %vm62 = vcmask 1043456
    %v64 = vsel %vm62, %v20, 0
    %66 = vmatpush.msra.mxu0 0.0
    %67 = vmatpush.msra.mxu0 0.0
    %68 = vmatpush.msra.mxu0 0.0
    %69 = vmatpush.msra.mxu0 0.0
    %70 = vmatpush.msra.mxu0 0.0
    %71 = vmatpush.msra.mxu0 0.0
    %72 = vmatpush.msra.mxu0 0.0
    %73 = vmatpush.msra.mxu0 0.0
    %74 = vmatpush.msra.mxu0 0.0
    %75 = vmatpush.msra.mxu0 0.0
    %76 = vmatpush.msra.mxu0 0.0
    %77 = vmatpush.msra.mxu0 0.0
    %78 = vmatpush.msra.mxu0 0.0
    %79 = vmatpush.msra.mxu0 %v64
    %80 = vmatpush.msra.mxu0 %v19
    %81 = vmatpush.msra.mxu0 %v18
    %82 = vmatmul.f32.gmra.mxu0 %v51
    %v83 = vpop.f32.mrf.mxu0
    %v84 = vadd.f32 %v32, %v83
    %85 = vmatmul.f32.gmra.mxu0 %v54
    %v86 = vpop.f32.mrf.mxu0
    %v87 = vadd.f32 %v37, %v86
    %88 = vmatmul.f32.gmra.mxu0 %v57
    %v89 = vpop.f32.mrf.mxu0
    %v90 = vadd.f32 %v42, %v89
    %91 = vmatmul.f32.gmra.mxu0 %v60
    %v92 = vpop.f32.mrf.mxu0
    %v93 = vadd.f32 %v47, %v92
    %94 = vdwg.mxu0
    %vm95 = vcmask 64512
    %v96 = vsel %vm95, %v84, 0.0
    %v97 = vsel %vm95, %v87, 0.0
    %v98 = vadd.f32 %v96, %v97
    %v99 = vsel %vm95, %v90, 0.0
    %v100 = vadd.f32 %v98, %v99
    %v101 = vsel %vm95, %v93, 0.0
    %v102 = vadd.f32 %v100, %v101
    %v103 = vrot.slane %v102, 4
    %v104 = vadd.f32 %v102, %v103
    %v105 = vrot.slane %v104, 2
    %v106 = vadd.f32 %v104, %v105
    %v107 = vrot.slane %v106, 1
    %v108 = vadd.f32 %v106, %v107
    %v109 = vrcp.pop 32.0
    %v110 = vmul.f32 32.0, %v109
    %v111 = vsub.f32 1.0, %v110
    %v112 = vmul.f32 %v109, %v111
    %v113 = vadd.f32 %v109, %v112
    %vm114 = vweird.f32 %v109
    %v115 = vsel %vm114, %v109, %v113
    %v116 = vmul.f32 %v108, %v115
    %v117 = vsub.f32 %v84, %v116
    %v118 = vsub.f32 %v87, %v116
    %v119 = vsub.f32 %v90, %v116
    %v120 = vsub.f32 %v93, %v116
    %v121 = vmul.f32 %v117, %v117
    %v122 = vmul.f32 %v118, %v118
    %v123 = vmul.f32 %v119, %v119
    %v124 = vmul.f32 %v120, %v120
    %v125 = vsel %vm95, %v121, 0.0
    %v126 = vsel %vm95, %v122, 0.0
    %v127 = vadd.f32 %v125, %v126
    %v128 = vsel %vm95, %v123, 0.0
    %v129 = vadd.f32 %v127, %v128
    %v130 = vsel %vm95, %v124, 0.0
    %v131 = vadd.f32 %v129, %v130
    %v132 = vrot.slane %v131, 4
    %v133 = vadd.f32 %v131, %v132
    %v134 = vrot.slane %v133, 2
    %v135 = vadd.f32 %v133, %v134
    %v136 = vrot.slane %v135, 1
    %v137 = vadd.f32 %v135, %v136
    %v138 = vmul.f32 %v137, %v115
    %v139 = vadd.f32 %v138, 1e-05
    %v140 = vrsqrt.pop %v139
    %v141 = vmul.f32 %v140, %v139
    %v142 = vmul.f32 %v141, %v140
    %v143 = vmul.f32 0.5, %v142
    %v144 = vsub.f32 1.5, %v143
    %v145 = vmul.f32 %v140, %v144
    %vm146 = vweird.f32 %v139
    %vm147 = vweird.f32 %v140
    %vm148 = vmor %vm146, %vm147
    %v149 = vsel %vm148, %v140, %v145
    %v150 = vmul.f32 %v117, %v149
    %v151 = vmul.f32 %v118, %v149
    %v152 = vmul.f32 %v119, %v149
    %v153 = vmul.f32 %v120, %v149
    %154 = vset.pattern.permute.xlu0 1
    %155 = vperm.xlu0 %154, %v21
    %v156 = vpop.permute.xlu0 %155
    %158 = vset.pattern.permute.xlu0 1
    %159 = vperm.xlu0 %158, %v22
    %v160 = vpop.permute.xlu0 %159
    %162 = vset.pattern.permute.xlu0 1
    %163 = vperm.xlu0 %162, %v23
    %v164 = vpop.permute.xlu0 %163
    %166 = vset.pattern.permute.xlu0 1
    %167 = vperm.xlu0 %166, %v24
    %v168 = vpop.permute.xlu0 %167
    %v170 = vmul.f32 %v150, %v156
    %v171 = vmul.f32 %v151, %v160
    %v172 = vmul.f32 %v152, %v164
    %v173 = vmul.f32 %v153, %v168
    %174 = vset.pattern.permute.xlu0 2
    %175 = vperm.xlu0 %174, %v21
    %v176 = vpop.permute.xlu0 %175
    %178 = vset.pattern.permute.xlu0 2
    %179 = vperm.xlu0 %178, %v22
    %v180 = vpop.permute.xlu0 %179
    %182 = vset.pattern.permute.xlu0 2
    %183 = vperm.xlu0 %182, %v23
    %v184 = vpop.permute.xlu0 %183
    %186 = vset.pattern.permute.xlu0 2
    %187 = vperm.xlu0 %186, %v24
    %v188 = vpop.permute.xlu0 %187
    %v190 = vadd.f32 %v170, %v176
    %v191 = vadd.f32 %v171, %v180
    %v192 = vadd.f32 %v172, %v184
    %v193 = vadd.f32 %v173, %v188
    %v194 = vtanh.pop %v190
    %v195 = vtanh.pop %v191
    %v196 = vtanh.pop %v192
    %v197 = vtanh.pop %v193
    %v198 = vld [vmem:[%s2] sm:$0xff]
    %v199 = vld [vmem:[%s2 + $0x8] sm:$0xff]
    %v200 = vld [vmem:[%s2 + $0x10] sm:$0xff]
    %v201 = vld [vmem:[%s2 + $0x18] sm:$0xff]
    %202 = vset.pattern.permute.xlu0 3
    %203 = vperm.xlu0 %202, %v21
    %v204 = vpop.permute.xlu0 %203
    %206 = vset.pattern.permute.xlu0 3
    %207 = vperm.xlu0 %206, %v22
    %v208 = vpop.permute.xlu0 %207
    %210 = vset.pattern.permute.xlu0 3
    %211 = vperm.xlu0 %210, %v23
    %v212 = vpop.permute.xlu0 %211
    %214 = vset.pattern.permute.xlu0 3
    %215 = vperm.xlu0 %214, %v24
    %v216 = vpop.permute.xlu0 %215
    %vm218 = vcmask 261120
    %v220 = vsel %vm218, %v198, 0
    %v223 = vsel %vm218, %v199, 0
    %v226 = vsel %vm218, %v200, 0
    %v229 = vsel %vm218, %v201, 0
    %231 = vmatpush.msra.mxu0 0.0
    %232 = vmatpush.msra.mxu0 0.0
    %233 = vmatpush.msra.mxu0 0.0
    %234 = vmatpush.msra.mxu0 0.0
    %235 = vmatpush.msra.mxu0 0.0
    %236 = vmatpush.msra.mxu0 0.0
    %237 = vmatpush.msra.mxu0 0.0
    %238 = vmatpush.msra.mxu0 0.0
    %239 = vmatpush.msra.mxu0 0.0
    %240 = vmatpush.msra.mxu0 0.0
    %241 = vmatpush.msra.mxu0 0.0
    %242 = vmatpush.msra.mxu0 0.0
    %243 = vmatpush.msra.mxu0 %v197
    %244 = vmatpush.msra.mxu0 %v196
    %245 = vmatpush.msra.mxu0 %v195
    %246 = vmatpush.msra.mxu0 %v194
    %247 = vmatmul.f32.gmra.mxu0 %v220
    %v248 = vpop.f32.mrf.mxu0
    %v249 = vadd.f32 %v204, %v248
    %250 = vmatmul.f32.gmra.mxu0 %v223
    %v251 = vpop.f32.mrf.mxu0
    %v252 = vadd.f32 %v208, %v251
    %253 = vmatmul.f32.gmra.mxu0 %v226
    %v254 = vpop.f32.mrf.mxu0
    %v255 = vadd.f32 %v212, %v254
    %256 = vmatmul.f32.gmra.mxu0 %v229
    %v257 = vpop.f32.mrf.mxu0
    %v258 = vadd.f32 %v216, %v257
    %259 = vdwg.mxu0
    %v260 = vsel %vm95, %v249, 0.0
    %v261 = vsel %vm95, %v252, 0.0
    %v262 = vadd.f32 %v260, %v261
    %v263 = vsel %vm95, %v255, 0.0
    %v264 = vadd.f32 %v262, %v263
    %v265 = vsel %vm95, %v258, 0.0
    %v266 = vadd.f32 %v264, %v265
    %v267 = vrot.slane %v266, 4
    %v268 = vadd.f32 %v266, %v267
    %v269 = vrot.slane %v268, 2
    %v270 = vadd.f32 %v268, %v269
    %v271 = vrot.slane %v270, 1
    %v272 = vadd.f32 %v270, %v271
    %v273 = vmul.f32 %v272, %v115
    %v274 = vsub.f32 %v249, %v273
    %v275 = vsub.f32 %v252, %v273
    %v276 = vsub.f32 %v255, %v273
    %v277 = vsub.f32 %v258, %v273
    %v278 = vmul.f32 %v274, %v274
    %v279 = vmul.f32 %v275, %v275
    %v280 = vmul.f32 %v276, %v276
    %v281 = vmul.f32 %v277, %v277
    %v282 = vsel %vm95, %v278, 0.0
    %v283 = vsel %vm95, %v279, 0.0
    %v284 = vadd.f32 %v282, %v283
    %v285 = vsel %vm95, %v280, 0.0
    %v286 = vadd.f32 %v284, %v285
    %v287 = vsel %vm95, %v281, 0.0
    %v288 = vadd.f32 %v286, %v287
    %v289 = vrot.slane %v288, 4
    %v290 = vadd.f32 %v288, %v289
    %v291 = vrot.slane %v290, 2
    %v292 = vadd.f32 %v290, %v291
    %v293 = vrot.slane %v292, 1
    %v294 = vadd.f32 %v292, %v293
    %v295 = vmul.f32 %v294, %v115
    %v296 = vadd.f32 %v295, 1e-05
    %v297 = vrsqrt.pop %v296
    %v298 = vmul.f32 %v297, %v296
    %v299 = vmul.f32 %v298, %v297
    %v300 = vmul.f32 0.5, %v299
    %v301 = vsub.f32 1.5, %v300
    %v302 = vmul.f32 %v297, %v301
    %vm303 = vweird.f32 %v296
    %vm304 = vweird.f32 %v297
    %vm305 = vmor %vm303, %vm304
    %v306 = vsel %vm305, %v297, %v302
    %v307 = vmul.f32 %v274, %v306
    %v308 = vmul.f32 %v275, %v306
    %v309 = vmul.f32 %v276, %v306
    %v310 = vmul.f32 %v277, %v306
    %311 = vset.pattern.permute.xlu0 4
    %312 = vperm.xlu0 %311, %v21
    %v313 = vpop.permute.xlu0 %312
    %315 = vset.pattern.permute.xlu0 4
    %316 = vperm.xlu0 %315, %v22
    %v317 = vpop.permute.xlu0 %316
    %319 = vset.pattern.permute.xlu0 4
    %320 = vperm.xlu0 %319, %v23
    %v321 = vpop.permute.xlu0 %320
    %323 = vset.pattern.permute.xlu0 4
    %324 = vperm.xlu0 %323, %v24
    %v325 = vpop.permute.xlu0 %324
    %v327 = vmul.f32 %v307, %v313
    %v328 = vmul.f32 %v308, %v317
    %v329 = vmul.f32 %v309, %v321
    %v330 = vmul.f32 %v310, %v325
    %331 = vset.pattern.permute.xlu0 5
    %332 = vperm.xlu0 %331, %v21
    %v333 = vpop.permute.xlu0 %332
    %335 = vset.pattern.permute.xlu0 5
    %336 = vperm.xlu0 %335, %v22
    %v337 = vpop.permute.xlu0 %336
    %339 = vset.pattern.permute.xlu0 5
    %340 = vperm.xlu0 %339, %v23
    %v341 = vpop.permute.xlu0 %340
    %343 = vset.pattern.permute.xlu0 5
    %344 = vperm.xlu0 %343, %v24
    %v345 = vpop.permute.xlu0 %344
    %v347 = vadd.f32 %v327, %v333
    %v348 = vadd.f32 %v328, %v337
    %v349 = vadd.f32 %v329, %v341
    %v350 = vadd.f32 %v330, %v345
    %v351 = vtanh.pop %v347
    %v352 = vtanh.pop %v348
    %v353 = vtanh.pop %v349
    %v354 = vtanh.pop %v350
    %355 = vset.pattern.permute.xlu0 6
    %356 = vperm.xlu0 %355, %v21
    %v357 = vpop.permute.xlu0 %356
    %359 = vset.pattern.permute.xlu0 6
    %360 = vperm.xlu0 %359, %v22
    %v361 = vpop.permute.xlu0 %360
    %363 = vset.pattern.permute.xlu0 6
    %364 = vperm.xlu0 %363, %v23
    %v365 = vpop.permute.xlu0 %364
    %367 = vset.pattern.permute.xlu0 6
    %368 = vperm.xlu0 %367, %v24
    %v369 = vpop.permute.xlu0 %368
    %v371 = vmul.f32 %v351, %v357
    %v372 = vmul.f32 %v352, %v361
    %v373 = vmul.f32 %v353, %v365
    %v374 = vmul.f32 %v354, %v369
    %v375 = vsel %vm95, %v371, 0.0
    %v376 = vsel %vm95, %v372, 0.0
    %v377 = vadd.f32 %v375, %v376
    %v378 = vsel %vm95, %v373, 0.0
    %v379 = vadd.f32 %v377, %v378
    %v380 = vsel %vm95, %v374, 0.0
    %v381 = vadd.f32 %v379, %v380
    %v382 = vrot.slane %v381, 4
    %v383 = vadd.f32 %v381, %v382
    %v384 = vrot.slane %v383, 2
    %v385 = vadd.f32 %v383, %v384
    %v386 = vrot.slane %v385, 1
    %v387 = vadd.f32 %v385, %v386
    %388 = vset.pattern.permute.xlu0 7
    %389 = vperm.xlu0 %388, %v21
    %v390 = vpop.permute.xlu0 %389
    %v392 = vadd.f32 %v387, %v390
    %vm393 = vcmask 57344
    %394 = vst.msk [vmem:[#allocation2] sm:$0x1] %vm393, %v392
    // Predicated region
    $region18: #{tpu_custom_call.1} parent=1 // pred_check
      _
    $region19: #{tpu_custom_call.1} parent=1 // pred_check_branch
      %396 = sbr.rel (0) target = $region21
    $region20: #{tpu_custom_call.1} parent=1 // pred_region
      %398 = vsyncadd [#allocation3], 0
      %s400 = sshll.u32 [#allocation2], 4
      %s401 = int_to_ptr.vmem [resolvable:$true] %s400
      %s402 = sshll.u32 %s4, 4
      %s403 = int_to_ptr.hbm [resolvable:$true] %s402
      %405 = dma.vmem_to_hbm [thread:$0]  %s401, 16, %s403, [#allocation3]
    $region21: #{tpu_custom_call.1} parent=1 // pred_fallthru
      _
    // Predicated region
    $region22: #{tpu_custom_call.1} parent=1 // pred_check
      _
    $region23: #{tpu_custom_call.1} parent=1 // pred_check_branch
      %407 = sbr.rel (0) target = $region25
    $region24: #{tpu_custom_call.1} parent=1 // pred_region
      %409 = dma.done [#allocation3], 16
    $region25: #{tpu_custom_call.1} parent=1 // pred_fallthru
      _
    %410 = vsyncpa [#allocation3], 1

</llo_original>
